<compile_context>
chip_gen: v5e
topology: v5e:2x2
jax: 0.10.0
libtpu: 0.0.40
codegen_flags: <defaults>
</compile_context>

<pallas_src>
import functools
import math

import jax
import jax.numpy as jnp
from jax.experimental import pallas as pl
from jax.experimental.pallas import tpu as pltpu

_BN_EPS = 1e-5
_TN_CAP = 256
_TM_CAP = 256
_VMEM_WS_BUDGET = 12 * 1024 * 1024     # target for the pipelined working set
_VMEM_LIMIT = 40 * 1024 * 1024         # scoped VMEM limit, safe on v5e/v6e/v7x

_COMPILER_PARAMS = pltpu.CompilerParams(
    dimension_semantics=("parallel", "parallel", "arbitrary"),
    vmem_limit_bytes=_VMEM_LIMIT)


# ----------------------------------------------------------------------------
# Pallas GEMM kernels: out_bf16 = act( bias + X @ W [+ R] )   (f32 accumulate)
# ----------------------------------------------------------------------------
def _mm_kernel(x_ref, w_ref, b_ref, o_ref, acc_ref, *, relu):
    @pl.when(pl.program_id(2) == 0)
    def _():
        # initialize accumulator with the (folded) bias, broadcast over rows
        acc_ref[...] = jnp.zeros_like(acc_ref) + b_ref[...]

    acc_ref[...] += jnp.dot(x_ref[...], w_ref[...],
                            preferred_element_type=jnp.float32)

    @pl.when(pl.program_id(2) == pl.num_programs(2) - 1)
    def _():
        y = acc_ref[...]
        if relu:
            y = jnp.maximum(y, 0.0)
        o_ref[...] = y.astype(o_ref.dtype)          # cast to bf16 in epilogue


def _mm_res_kernel(x_ref, w_ref, b_ref, r_ref, o_ref, acc_ref, *, relu):
    @pl.when(pl.program_id(2) == 0)
    def _():
        acc_ref[...] = jnp.zeros_like(acc_ref) + b_ref[...]

    acc_ref[...] += jnp.dot(x_ref[...], w_ref[...],
                            preferred_element_type=jnp.float32)

    @pl.when(pl.program_id(2) == pl.num_programs(2) - 1)
    def _():
        y = acc_ref[...] + r_ref[...].astype(jnp.float32)   # bf16 residual
        if relu:
            y = jnp.maximum(y, 0.0)
        o_ref[...] = y.astype(o_ref.dtype)


def _grid_spec(Mp, Np, Kp, tm, tn, tk, with_residual):
    in_specs = [
        pl.BlockSpec((tm, tk), lambda i, j, k: (i, k)),   # X  (bf16)
        pl.BlockSpec((tk, tn), lambda i, j, k: (k, j)),   # W  (bf16, BN-folded)
        pl.BlockSpec((1, tn), lambda i, j, k: (0, j)),    # bias (f32)
    ]
    if with_residual:
        in_specs.append(pl.BlockSpec((tm, tn), lambda i, j, k: (i, j)))  # R bf16
    return pltpu.PrefetchScalarGridSpec(
        num_scalar_prefetch=0,
        grid=(Mp // tm, Np // tn, Kp // tk),
        in_specs=in_specs,
        out_specs=pl.BlockSpec((tm, tn), lambda i, j, k: (i, j)),
        scratch_shapes=[pltpu.VMEM((tm, tn), jnp.float32)],
    )


def _gemm_bias_act(xp, wp, bp, *, tm, tn, tk, relu):
    Mp, Kp = xp.shape
    Np = wp.shape[1]
    cost = pl.CostEstimate(
        flops=2 * Mp * Kp * Np, transcendentals=0,
        bytes_accessed=Mp * Kp * 2 + Kp * Np * 2 + Np * 4 + Mp * Np * 2)
    return pl.pallas_call(
        functools.partial(_mm_kernel, relu=relu),
        out_shape=jax.ShapeDtypeStruct((Mp, Np), jnp.bfloat16),
        grid_spec=_grid_spec(Mp, Np, Kp, tm, tn, tk, with_residual=False),
        compiler_params=_COMPILER_PARAMS,
        cost_estimate=cost,
    )(xp, wp, bp)


def _gemm_bias_res_act(xp, wp, bp, rp, *, tm, tn, tk, relu):
    Mp, Kp = xp.shape
    Np = wp.shape[1]
    cost = pl.CostEstimate(
        flops=2 * Mp * Kp * Np, transcendentals=0,
        bytes_accessed=Mp * Kp * 2 + Kp * Np * 2 + Np * 4 + 2 * Mp * Np * 2)
    return pl.pallas_call(
        functools.partial(_mm_res_kernel, relu=relu),
        out_shape=jax.ShapeDtypeStruct((Mp, Np), jnp.bfloat16),
        grid_spec=_grid_spec(Mp, Np, Kp, tm, tn, tk, with_residual=True),
        compiler_params=_COMPILER_PARAMS,
        cost_estimate=cost,
    )(xp, wp, bp, rp)


# ----------------------------------------------------------------------------
# Tiling helpers
# ----------------------------------------------------------------------------
def _ru(x, m):
    return (x + m - 1) // m * m


def _largest_div_tile(d, cap):
    """Largest multiple of 128 dividing d (d is a multiple of 128), <= cap."""
    cap = max(cap, 128)
    best = 128
    t = 128
    while t <= min(d, cap):
        if d % t == 0:
            best = t
        t += 128
    return best


def _kn_pad(K, Cout):
    Kp = _ru(K, 128)
    Np = _ru(Cout, 128)
    tn = Np if Np <= _TN_CAP else _largest_div_tile(Np, _TN_CAP)
    return Kp, Np, tn


def _m_tile(M):
    Mp = _ru(M, 16)                      # bf16 sublane packing => multiple of 16
    if Mp <= _TM_CAP:
        return Mp, Mp
    tm = _TM_CAP
    return _ru(Mp, tm), tm


def _pick_tk(Kp, tm, tn):
    """Largest 128-multiple tk dividing Kp with the double-buffered working set
    (X, W bf16 tiles + out/residual bf16 + f32 acc) under the VMEM budget."""
    fixed = 2 * (tm * tn * 2) * 2 + tm * tn * 4      # out + residual (x2 bufs) + acc
    per_k = 2 * (tm + tn) * 2                         # X + W, double-buffered, bf16
    cap = max(128, ((_VMEM_WS_BUDGET - fixed) // per_k) // 128 * 128)
    if Kp <= cap:
        return Kp                                     # full-K: single reduction step
    return _largest_div_tile(Kp, cap)


# ----------------------------------------------------------------------------
# Patch extraction (single fused XLA op) + fused conv unit
# ----------------------------------------------------------------------------
def _extract_patches(x, k, stride, pad):
    """x: NHWC bf16 -> (N*Ho*Wo, Cin*k*k) patches (feature order: Cin, kh, kw)."""
    N, H, W, C = x.shape
    Ho = (H + 2 * pad - k) // stride + 1
    Wo = (W + 2 * pad - k) // stride + 1
    if k == 1 and pad == 0 and stride == 1:
        return x.reshape(N * H * W, C), (N, H, W)
    p = jax.lax.conv_general_dilated_patches(
        x, filter_shape=(k, k), window_strides=(stride, stride),
        padding=((pad, pad), (pad, pad)),
        dimension_numbers=("NHWC", "HWIO", "NHWC"))
    return p.reshape(N * Ho * Wo, C * k * k), (N, Ho, Wo)


@functools.partial(jax.jit, static_argnames=("stride", "pad", "relu"))
def conv_unit(x, layer, residual=None, *, stride, pad, relu):
    """Fused conv + folded-BN bias + optional residual + optional ReLU (bf16 out)."""
    x = x.astype(jnp.bfloat16)
    p2d, (N, Ho, Wo) = _extract_patches(x, layer.k, stride, pad)
    M, K = p2d.shape
    Kp, Np = layer.w.shape
    Cout = layer.cout
    tn = layer.tn
    Mp, tm = _m_tile(M)
    tk = _pick_tk(Kp, tm, tn)
    xp = p2d if (Mp == M and Kp == K) else jnp.pad(p2d, ((0, Mp - M), (0, Kp - K)))
    if residual is None:
        out = _gemm_bias_act(xp, layer.w, layer.b, tm=tm, tn=tn, tk=tk, relu=relu)
    else:
        r2d = residual.reshape(M, Cout).astype(jnp.bfloat16)
        rp = r2d if (Mp == M and Np == Cout) else jnp.pad(
            r2d, ((0, Mp - M), (0, Np - Cout)))
        out = _gemm_bias_res_act(xp, layer.w, layer.b, rp,
                                 tm=tm, tn=tn, tk=tk, relu=relu)
    return out[:M, :Cout].reshape(N, Ho, Wo, Cout)


# ----------------------------------------------------------------------------
# Prepared conv layer container (arrays are pytree children; k/cout/tn static)
# ----------------------------------------------------------------------------
@jax.tree_util.register_pytree_node_class
class ConvLayer:
    def __init__(self, w, b, k, cout, tn):
        self.w, self.b, self.k, self.cout, self.tn = w, b, k, cout, tn

    def tree_flatten(self):
        return (self.w, self.b), (self.k, self.cout, self.tn)

    @classmethod
    def tree_unflatten(cls, aux, children):
        return cls(children[0], children[1], *aux)


# ----------------------------------------------------------------------------
# Parameter init (deterministic, mirrors the PyTorch __init__ shapes)
# ----------------------------------------------------------------------------
class KeyGen:
    def __init__(self, seed):
        self.key = jax.random.PRNGKey(seed)

    def __call__(self):
        self.key, sub = jax.random.split(self.key)
        return sub


def init_conv(kg, cin, cout, k, bias=False):
    # kaiming_normal, fan_out, relu.  Weight layout: (Cin*kh*kw, Cout), with
    # (Cin, kh, kw) K-ordering to match conv_general_dilated_patches.
    std = math.sqrt(2.0 / (cout * k * k))
    w = jax.random.normal(kg(), (cin * k * k, cout), jnp.float32) * std
    p = {'w': w, 'k': k}
    p['b'] = jnp.zeros((cout,), jnp.float32) if bias else None
    return p


def init_bn(c):
    return {'gamma': jnp.ones((c,), jnp.float32),
            'beta': jnp.zeros((c,), jnp.float32),
            'mean': jnp.zeros((c,), jnp.float32),
            'var': jnp.ones((c,), jnp.float32)}


def init_conv_bn(kg, cin, cout, k, bias=False):
    return {'conv': init_conv(kg, cin, cout, k, bias), 'bn': init_bn(cout)}


def init_basic_block(kg, inplanes, planes, with_ds):
    p = {'cb1': init_conv_bn(kg, inplanes, planes, 3),
         'cb2': init_conv_bn(kg, planes, planes, 3)}
    if with_ds:
        p['ds'] = init_conv_bn(kg, inplanes, planes, 1)
    return p


def init_dbb(kg, inplanes, planes, with_ds=False):
    return {'bb1': init_basic_block(kg, inplanes, planes, with_ds),
            'bb2': init_basic_block(kg, planes, planes, False)}


def init_xnet(seed, in_channels, num_classes):
    kg = KeyGen(seed)
    l1, l2, l3, l4, l5 = 64, 128, 256, 512, 1024
    P = {}
    # ----- branch 1 -----
    P['b1_1_1'] = {'c1': init_conv(kg, in_channels, l1, 3),
                   'c2': init_conv(kg, l1, l1, 3),
                   'bb': init_basic_block(kg, l1, l1, False)}
    P['b1_1_2_down'] = init_conv_bn(kg, l1, l2, 3)
    P['b1_1_3'] = init_dbb(kg, l1 + l1, l1, True)
    P['b1_1_4'] = init_conv(kg, l1, num_classes, 1, bias=True)
    P['b1_2_1'] = init_dbb(kg, l2, l2)
    P['b1_2_2_down'] = init_conv_bn(kg, l2, l3, 3)
    P['b1_2_3'] = init_dbb(kg, l2 + l2, l2, True)
    P['b1_2_4_up'] = init_conv_bn(kg, l2, l1, 3, bias=True)
    P['b1_3_1'] = init_dbb(kg, l3, l3)
    P['b1_3_2_down'] = init_conv_bn(kg, l3, l4, 3)
    P['b1_3_2'] = init_dbb(kg, l3, l3)
    P['b1_3_3_down'] = init_conv_bn(kg, l3, l3, 3)
    P['b1_3_3_down_down'] = init_conv_bn(kg, l3, l3, 3)
    P['b1_3_3_same'] = init_conv_bn(kg, l3, l3, 3)
    P['b1_3_4_transition'] = init_conv_bn(kg, l3 + l5 + l4, l3, 1)
    P['b1_3_5'] = init_dbb(kg, l3, l3)
    P['b1_3_6'] = init_dbb(kg, l3 + l3, l3, True)
    P['b1_3_7_up'] = init_conv_bn(kg, l3, l2, 3, bias=True)
    P['b1_4_1'] = init_dbb(kg, l4, l4)
    P['b1_4_2_down'] = init_conv_bn(kg, l4, l5, 3)
    P['b1_4_2'] = init_dbb(kg, l4, l4)
    P['b1_4_3_down'] = init_conv_bn(kg, l4, l4, 3)
    P['b1_4_3_same'] = init_conv_bn(kg, l4, l4, 3)
    P['b1_4_4_transition'] = init_conv_bn(kg, l4 + l5 + l4, l4, 1)
    P['b1_4_5'] = init_dbb(kg, l4, l4)
    P['b1_4_6'] = init_dbb(kg, l4 + l4, l4, True)
    P['b1_4_7_up'] = init_conv_bn(kg, l4, l3, 3, bias=True)
    P['b1_5_1'] = init_dbb(kg, l5, l5)
    P['b1_5_2_up'] = init_conv_bn(kg, l5, l5, 3, bias=True)
    P['b1_5_2_same'] = init_conv_bn(kg, l5, l5, 3)
    P['b1_5_3_transition'] = init_conv_bn(kg, l5 + l5 + l4, l5, 1)
    P['b1_5_4'] = init_dbb(kg, l5, l5)
    P['b1_5_5_up'] = init_conv_bn(kg, l5, l4, 3, bias=True)
    # ----- branch 2 -----
    P['b2_1_1'] = {'c1': init_conv(kg, 1, l1, 3),
                   'c2': init_conv(kg, l1, l1, 3),
                   'bb': init_basic_block(kg, l1, l1, False)}
    P['b2_1_2_down'] = init_conv_bn(kg, l1, l2, 3)
    P['b2_1_3'] = init_dbb(kg, l1 + l1, l1, True)
    P['b2_1_4'] = init_conv(kg, l1, num_classes, 1, bias=True)
    P['b2_2_1'] = init_dbb(kg, l2, l2)
    P['b2_2_2_down'] = init_conv_bn(kg, l2, l3, 3)
    P['b2_2_3'] = init_dbb(kg, l2 + l2, l2, True)
    P['b2_2_4_up'] = init_conv_bn(kg, l2, l1, 3, bias=True)
    P['b2_3_1'] = init_dbb(kg, l3, l3)
    P['b2_3_2_down'] = init_conv_bn(kg, l3, l4, 3)
    P['b2_3_3'] = init_dbb(kg, l3 + l3, l3, True)
    P['b2_3_4_up'] = init_conv_bn(kg, l3, l2, 3, bias=True)
    P['b2_4_1'] = init_dbb(kg, l4, l4)
    P['b2_4_2_down'] = init_conv_bn(kg, l4, l5, 3)
    P['b2_4_2'] = init_dbb(kg, l4, l4)
    P['b2_4_3_down'] = init_conv_bn(kg, l4, l4, 3)
    P['b2_4_3_same'] = init_conv_bn(kg, l4, l4, 3)
    P['b2_4_3_up'] = init_conv_bn(kg, l4, l4, 3, bias=True)
    P['b2_4_4_transition'] = init_conv_bn(kg, l4 + l5 + l4 + l3, l4, 1)
    P['b2_4_5'] = init_dbb(kg, l4, l4)
    P['b2_4_6'] = init_dbb(kg, l4 + l4, l4, True)
    P['b2_4_7_up'] = init_conv_bn(kg, l4, l3, 3, bias=True)
    P['b2_5_1'] = init_dbb(kg, l5, l5)
    P['b2_5_2_up'] = init_conv_bn(kg, l5, l5, 3, bias=True)
    P['b2_5_2_up_up'] = init_conv_bn(kg, l5, l5, 3, bias=True)
    P['b2_5_2_same'] = init_conv_bn(kg, l5, l5, 3)
    P['b2_5_3_transition'] = init_conv_bn(kg, l5 + l5 + l4 + l3, l5, 1)
    P['b2_5_4'] = init_dbb(kg, l5, l5)
    P['b2_5_5_up'] = init_conv_bn(kg, l5, l4, 3, bias=True)
    return P


# ----------------------------------------------------------------------------
# One-time parameter preparation: fold BN into weights, pad, cast to bf16
# ----------------------------------------------------------------------------
def _prep_conv(conv, bn=None):
    w2d = conv['w']                              # (Cin*k*k, Cout), f32
    K, Cout = w2d.shape
    cb = conv.get('b')
    cb = cb if cb is not None else jnp.zeros((Cout,), jnp.float32)
    if bn is not None:
        inv = bn['gamma'] / jnp.sqrt(bn['var'] + _BN_EPS)
        bias = (cb - bn['mean']) * inv + bn['beta']
        w2d = w2d * inv[None, :]                 # fold BN scale into weights
    else:
        bias = cb
    Kp, Np, tn = _kn_pad(K, Cout)
    wp = jnp.pad(w2d, ((0, Kp - K), (0, Np - Cout))).astype(jnp.bfloat16)
    bp = jnp.pad(bias, (0, Np - Cout)).reshape(1, Np).astype(jnp.float32)
    return ConvLayer(wp, bp, conv['k'], Cout, tn)


def prepare_params(node):
    if isinstance(node, dict):
        if 'conv' in node and 'bn' in node:
            return _prep_conv(node['conv'], node['bn'])
        if 'w' in node and 'k' in node:
            return _prep_conv(node, None)
        return {k: prepare_params(v) for k, v in node.items()}
    return node


# ----------------------------------------------------------------------------
# Module-level apply functions (glue around the Pallas conv kernel)
# ----------------------------------------------------------------------------
def apply_layer(x, layer, *, stride=1, pad=0, relu=True, residual=None):
    return conv_unit(x, layer, residual, stride=stride, pad=pad, relu=relu)


def apply_basic_block(x, p):
    identity = x
    out = apply_layer(x, p['cb1'], stride=1, pad=1, relu=True)
    if 'ds' in p:
        identity = apply_layer(x, p['ds'], stride=1, pad=0, relu=False)
    # relu(bn2(conv2(out)) + identity) -- residual & relu fused in kernel
    return apply_layer(out, p['cb2'], stride=1, pad=1, relu=True,
                       residual=identity)


def apply_dbb(x, p):
    return apply_basic_block(apply_basic_block(x, p['bb1']), p['bb2'])


def apply_down(x, p):
    return apply_layer(x, p, stride=2, pad=1, relu=True)


def apply_same(x, p):
    return apply_layer(x, p, stride=1, pad=1, relu=True)


def apply_transition(x, p):
    return apply_layer(x, p, stride=1, pad=0, relu=True)


def upsample2x_bilinear_align_corners(x):
    """NHWC bilinear x2 upsample, align_corners=True (matches nn.Upsample)."""
    N, H, W, C = x.shape
    Ho, Wo = 2 * H, 2 * W

    def mat(n_in, n_out):
        if n_in == 1:
            return jnp.ones((n_out, 1), jnp.float32)
        src = jnp.arange(n_out, dtype=jnp.float32) * ((n_in - 1) / (n_out - 1))
        lo = jnp.floor(src).astype(jnp.int32)
        hi = jnp.minimum(lo + 1, n_in - 1)
        frac = src - lo.astype(jnp.float32)
        m = jnp.zeros((n_out, n_in), jnp.float32)
        m = m.at[jnp.arange(n_out), lo].add(1.0 - frac)
        m = m.at[jnp.arange(n_out), hi].add(frac)
        return m

    Mh, Mw = mat(H, Ho), mat(W, Wo)
    xf = x.astype(jnp.float32)
    xf = jnp.einsum('oh,nhwc->nowc', Mh, xf)
    xf = jnp.einsum('pw,nowc->nopc', Mw, xf)
    return xf.astype(jnp.bfloat16)


def apply_up(x, p):
    x = upsample2x_bilinear_align_corners(x)
    return apply_layer(x, p, stride=1, pad=1, relu=True)


def apply_stem(x, p):
    x = apply_layer(x, p['c1'], stride=1, pad=1, relu=False)
    x = apply_layer(x, p['c2'], stride=1, pad=1, relu=False)
    return apply_basic_block(x, p['bb'])


# ----------------------------------------------------------------------------
# Full XNet_3_2_m forward (NCHW in / NCHW out, matching the PyTorch module)
# ----------------------------------------------------------------------------
def xnet_forward(P, input1, input2):
    cat = lambda *xs: jnp.concatenate(xs, axis=-1)
    x1 = jnp.transpose(input1, (0, 2, 3, 1)).astype(jnp.bfloat16)
    x2 = jnp.transpose(input2, (0, 2, 3, 1)).astype(jnp.bfloat16)

    x1_1 = apply_stem(x1, P['b1_1_1'])
    x1_2 = apply_down(x1_1, P['b1_1_2_down'])
    x1_2 = apply_dbb(x1_2, P['b1_2_1'])
    x1_3_1 = apply_down(x1_2, P['b1_2_2_down'])
    x1_3_1 = apply_dbb(x1_3_1, P['b1_3_1'])
    x1_3_2 = apply_dbb(x1_3_1, P['b1_3_2'])
    x1_3_3_down = apply_down(x1_3_2, P['b1_3_3_down'])
    x1_3_3_down_down = apply_down(x1_3_3_down, P['b1_3_3_down_down'])
    x1_3_3_same = apply_same(x1_3_2, P['b1_3_3_same'])
    x1_4_1 = apply_down(x1_3_1, P['b1_3_2_down'])
    x1_4_1 = apply_dbb(x1_4_1, P['b1_4_1'])
    x1_4_2 = apply_dbb(x1_4_1, P['b1_4_2'])
    x1_4_3_down = apply_down(x1_4_2, P['b1_4_3_down'])
    x1_4_3_same = apply_same(x1_4_2, P['b1_4_3_same'])
    x1_5_1 = apply_down(x1_4_1, P['b1_4_2_down'])
    x1_5_1 = apply_dbb(x1_5_1, P['b1_5_1'])
    x1_5_2_up = apply_up(x1_5_1, P['b1_5_2_up'])
    x1_5_2_same = apply_same(x1_5_1, P['b1_5_2_same'])

    x2_1 = apply_stem(x2, P['b2_1_1'])
    x2_2 = apply_down(x2_1, P['b2_1_2_down'])
    x2_2 = apply_dbb(x2_2, P['b2_2_1'])
    x2_3 = apply_down(x2_2, P['b2_2_2_down'])
    x2_3 = apply_dbb(x2_3, P['b2_3_1'])
    x2_4_1 = apply_down(x2_3, P['b2_3_2_down'])
    x2_4_1 = apply_dbb(x2_4_1, P['b2_4_1'])
    x2_4_2 = apply_dbb(x2_4_1, P['b2_4_2'])
    x2_4_3_down = apply_down(x2_4_2, P['b2_4_3_down'])
    x2_4_3_same = apply_same(x2_4_2, P['b2_4_3_same'])
    x2_4_3_up = apply_up(x2_4_2, P['b2_4_3_up'])
    x2_5_1 = apply_down(x2_4_1, P['b2_4_2_down'])
    x2_5_1 = apply_dbb(x2_5_1, P['b2_5_1'])
    x2_5_2_up = apply_up(x2_5_1, P['b2_5_2_up'])
    x2_5_2_up_up = apply_up(x2_5_2_up, P['b2_5_2_up_up'])
    x2_5_2_same = apply_same(x2_5_1, P['b2_5_2_same'])

    x1_5_3 = cat(x1_5_2_same, x2_4_3_down, x2_5_2_same)
    x1_5_3 = apply_transition(x1_5_3, P['b1_5_3_transition'])
    x1_5_3 = apply_dbb(x1_5_3, P['b1_5_4'])
    x1_5_3 = apply_up(x1_5_3, P['b1_5_5_up'])

    x1_4_4 = cat(x1_4_3_same, x2_4_3_same, x2_5_2_up)
    x1_4_4 = apply_transition(x1_4_4, P['b1_4_4_transition'])
    x1_4_4 = apply_dbb(x1_4_4, P['b1_4_5'])
    x1_4_4 = cat(x1_4_4, x1_5_3)
    x1_4_4 = apply_dbb(x1_4_4, P['b1_4_6'])
    x1_4_4 = apply_up(x1_4_4, P['b1_4_7_up'])

    x1_3_4 = cat(x1_3_3_same, x2_4_3_up, x2_5_2_up_up)
    x1_3_4 = apply_transition(x1_3_4, P['b1_3_4_transition'])
    x1_3_4 = apply_dbb(x1_3_4, P['b1_3_5'])
    x1_3_4 = cat(x1_3_4, x1_4_4)
    x1_3_4 = apply_dbb(x1_3_4, P['b1_3_6'])
    x1_3_4 = apply_up(x1_3_4, P['b1_3_7_up'])

    x2_5_3 = cat(x2_5_2_same, x1_3_3_down_down, x1_4_3_down, x1_5_2_same)
    x2_5_3 = apply_transition(x2_5_3, P['b2_5_3_transition'])
    x2_5_3 = apply_dbb(x2_5_3, P['b2_5_4'])
    x2_5_3 = apply_up(x2_5_3, P['b2_5_5_up'])

    x2_4_4 = cat(x2_4_3_same, x1_3_3_down, x1_4_3_same, x1_5_2_up)
    x2_4_4 = apply_transition(x2_4_4, P['b2_4_4_transition'])
    x2_4_4 = apply_dbb(x2_4_4, P['b2_4_5'])
    x2_4_4 = cat(x2_4_4, x2_5_3)
    x2_4_4 = apply_dbb(x2_4_4, P['b2_4_6'])
    x2_4_4 = apply_up(x2_4_4, P['b2_4_7_up'])

    x1_2 = cat(x1_2, x1_3_4)
    x1_2 = apply_dbb(x1_2, P['b1_2_3'])
    x1_2 = apply_up(x1_2, P['b1_2_4_up'])
    x1_1 = cat(x1_1, x1_2)
    x1_1 = apply_dbb(x1_1, P['b1_1_3'])
    x1_1 = apply_layer(x1_1, P['b1_1_4'], stride=1, pad=0, relu=False)

    x2_3 = cat(x2_3, x2_4_4)
    x2_3 = apply_dbb(x2_3, P['b2_3_3'])
    x2_3 = apply_up(x2_3, P['b2_3_4_up'])
    x2_2 = cat(x2_2, x2_3)
    x2_2 = apply_dbb(x2_2, P['b2_2_3'])
    x2_2 = apply_up(x2_2, P['b2_2_4_up'])
    x2_1 = cat(x2_1, x2_2)
    x2_1 = apply_dbb(x2_1, P['b2_1_3'])
    x2_1 = apply_layer(x2_1, P['b2_1_4'], stride=1, pad=0, relu=False)

    return (jnp.transpose(x1_1, (0, 3, 1, 2)).astype(jnp.float32),
            jnp.transpose(x2_1, (0, 3, 1, 2)).astype(jnp.float32))


# ----------------------------------------------------------------------------
if __name__ == "__main__":
    in_channels, num_classes = 3, 2
    B, H, W = 2, 16, 16          # spatial must be a multiple of 16 (5 levels)

    raw_params = init_xnet(0, in_channels, num_classes)
    params = prepare_params(raw_params)   # one-time BN fold + pad + bf16 cast
    del raw_params

    k1, k2 = jax.random.split(jax.random.PRNGKey(0))
    input1 = jax.random.normal(k1, (B, in_channels, H, W), jnp.float32)
    input2 = jax.random.normal(k2, (B, 1, H, W), jnp.float32)  # branch-2 is hard-coded 1-channel

    out1, out2 = xnet_forward(params, input1, input2)
    out1, out2 = jax.block_until_ready((out1, out2))

    assert out1.shape == (B, num_classes, H, W), out1.shape
    assert out2.shape == (B, num_classes, H, W), out2.shape
    assert bool(jnp.all(jnp.isfinite(out1))) and bool(jnp.all(jnp.isfinite(out2)))
    print("KERNEL_OK")
</pallas_src>

<mosaic_0001>
module attributes {stable_mosaic.version = 11 : i64} {
  func.func @_mm_kernel(%arg0: i32, %arg1: i32, %arg2: i32, %arg3: memref<256x128xbf16, #tpu.memory_space<vmem>>, %arg4: memref<128x128xbf16, #tpu.memory_space<vmem>>, %arg5: memref<1x128xf32, #tpu.memory_space<vmem>>, %arg6: memref<256x128xbf16, #tpu.memory_space<vmem>>, %arg7: memref<256x128xf32, #tpu.memory_space<vmem>>) attributes {dimension_semantics = [#tpu.dimension_semantics<parallel>, #tpu.dimension_semantics<parallel>, #tpu.dimension_semantics<arbitrary>], iteration_bounds = array<i64: 2, 1, 1>, scalar_prefetch = 0 : i64, scratch_operands = 1 : i64, tpu.core_type = #tpu.core_type<tc>, window_params = [{transform_indices = @transform_0, window_bounds = array<i64: 256, 128>}, {transform_indices = @transform_1, window_bounds = array<i64: 128, 128>}, {transform_indices = @transform_2, window_bounds = array<i64: 1, 128>}, {transform_indices = @transform_3, window_bounds = array<i64: 256, 128>}]} {
    %c0_i32 = arith.constant 0 : i32
    %0 = arith.cmpi eq, %arg2, %c0_i32 : i32
    %1 = arith.extui %0 : i1 to i32
    %c0_i32_0 = arith.constant 0 : i32
    %2 = arith.cmpi ne, %1, %c0_i32_0 : i32
    scf.if %2 {
      %cst_10 = arith.constant 0.000000e+00 : f32
      %12 = vector.broadcast %cst_10 : f32 to vector<256x128xf32>
      %c0_11 = arith.constant 0 : index
      %c0_12 = arith.constant 0 : index
      %13 = vector.load %arg5[%c0_11, %c0_12] : memref<1x128xf32, #tpu.memory_space<vmem>>, vector<1x128xf32>
      %14 = vector.broadcast %13 : vector<1x128xf32> to vector<256x128xf32>
      %15 = arith.addf %12, %14 : vector<256x128xf32>
      %c0_13 = arith.constant 0 : index
      %c0_14 = arith.constant 0 : index
      %16 = vector.load %arg7[%c0_13, %c0_14] : memref<256x128xf32, #tpu.memory_space<vmem>>, vector<256x128xf32>
      tpu.vector_store %arg7[%c0_13, %c0_14], %15 {strides = array<i32>} : memref<256x128xf32, #tpu.memory_space<vmem>>, vector<256x128xf32>,
    } else {
    }
    %c0 = arith.constant 0 : index
    %c0_1 = arith.constant 0 : index
    %3 = vector.load %arg7[%c0, %c0_1] : memref<256x128xf32, #tpu.memory_space<vmem>>, vector<256x128xf32>
    %c0_2 = arith.constant 0 : index
    %c0_3 = arith.constant 0 : index
    %4 = vector.load %arg3[%c0_2, %c0_3] : memref<256x128xbf16, #tpu.memory_space<vmem>>, vector<256x128xbf16>
    %c0_4 = arith.constant 0 : index
    %c0_5 = arith.constant 0 : index
    %5 = vector.load %arg4[%c0_4, %c0_5] : memref<128x128xbf16, #tpu.memory_space<vmem>>, vector<128x128xbf16>
    %cst = arith.constant dense<0.000000e+00> : vector<256x128xf32>
    %6 = tpu.matmul %4, %5, %cst {dimension_numbers = #tpu.dot_dimension_numbers<[1], [0], [0], [1], [0, 0, 1, 1], [], []>} : vector<256x128xbf16>, vector<128x128xbf16>, vector<256x128xf32> -> vector<256x128xf32>
    %7 = arith.addf %3, %6 : vector<256x128xf32>
    %c0_6 = arith.constant 0 : index
    %c0_7 = arith.constant 0 : index
    %8 = vector.load %arg7[%c0_6, %c0_7] : memref<256x128xf32, #tpu.memory_space<vmem>>, vector<256x128xf32>
    tpu.vector_store %arg7[%c0_6, %c0_7], %7 {strides = array<i32>} : memref<256x128xf32, #tpu.memory_space<vmem>>, vector<256x128xf32>,
    %c0_i32_8 = arith.constant 0 : i32
    %9 = arith.cmpi eq, %arg2, %c0_i32_8 : i32
    %10 = arith.extui %9 : i1 to i32
    %c0_i32_9 = arith.constant 0 : i32
    %11 = arith.cmpi ne, %10, %c0_i32_9 : i32
    scf.if %11 {
      %c0_10 = arith.constant 0 : index
      %c0_11 = arith.constant 0 : index
      %12 = vector.load %arg7[%c0_10, %c0_11] : memref<256x128xf32, #tpu.memory_space<vmem>>, vector<256x128xf32>
      %13 = arith.truncf %12 : vector<256x128xf32> to vector<256x128xbf16>
      %c0_12 = arith.constant 0 : index
      %c0_13 = arith.constant 0 : index
      %14 = vector.load %arg6[%c0_12, %c0_13] : memref<256x128xbf16, #tpu.memory_space<vmem>>, vector<256x128xbf16>
      tpu.vector_store %arg6[%c0_12, %c0_13], %13 {strides = array<i32>} : memref<256x128xbf16, #tpu.memory_space<vmem>>, vector<256x128xbf16>,
    } else {
    }
    return
  }
  func.func @transform_0(%arg0: i32, %arg1: i32, %arg2: i32) -> (i32, i32) {
    %c0_i32 = arith.constant 0 : i32
    return %arg0, %arg2 : i32, i32
  }
  func.func @transform_1(%arg0: i32, %arg1: i32, %arg2: i32) -> (i32, i32) {
    %c0_i32 = arith.constant 0 : i32
    return %arg2, %arg1 : i32, i32
  }
  func.func @transform_2(%arg0: i32, %arg1: i32, %arg2: i32) -> (i32, i32) {
    %c0_i32 = arith.constant 0 : i32
    %c0_i32_0 = arith.constant 0 : i32
    return %c0_i32, %arg1 : i32, i32
  }
  func.func @transform_3(%arg0: i32, %arg1: i32, %arg2: i32) -> (i32, i32) {
    %c0_i32 = arith.constant 0 : i32
    return %arg0, %arg1 : i32, i32
  }
}

</mosaic_0001>

<llo_original>
// kernel: conv_unit.1
$region0: #{conv_unit.1}
  #allocation0 [shape = 'u32[]', space=smem, size = 0x4, offset = 0x4, fixed_abs, tag = 'smem constant byte address 0x4 - core index']
  #allocation1 [shape = 'u32[72,128]{1,0:T(1,128)}', space=vmem, size = 0x9000, scoped, tag = 'internal scratch']
  #allocation2 [shape = 'f32[256,128]{1,0:T(8,128)}', space=vmem, size = 0x20000, scoped, tag = 'scratch operand']
  %s0 = inlined_call_operand.vmem [shape: bf16[512,128], index: 0, kind: input, shape index: {}]
  %s1 = inlined_call_operand.vmem [shape: bf16[128,128], index: 1, kind: input, shape index: {}]
  %s2 = inlined_call_operand.vmem [shape: f32[1,128], index: 2, kind: input, shape index: {}]
  %s3 = inlined_call_operand.hbm [shape: bf16[512,128], index: 3, kind: output, shape index: {}]
  %s4 = sld [smem:[#allocation0]]
  $region53: #{conv_unit.1} parent=0
    _
  %s6 = ssub.s32 1, %s4
  %s7 = scalar_select 0, %s6, %s4
  $region1: #{conv_unit.1} parent=0
    #allocation3 [shape = 'u8[131072]{0}', space=vmem, size = 0x20000, scoped, tag = 'output window, operand 0']
    #allocation4 [shape = 's32[2]{0}', space=sflag, size = 0x8, scoped, tag = 'scoped memory for conv_unit.1']
    %8 = vsyncpa [#allocation4], 0
    %s9 = scalar_lea.sflag [#allocation4], 1
    %10 = vsyncpa %s9, 0
    loop: start=0, step=1, limit=4
    $region2: #{conv_unit.1} parent=1 // loop_pre_header
      _
    $region3: #{conv_unit.1} parent=1 // loop_header
      %s12 = sphi 0, %s16
      %p13 = scmp.ge.s32.totalorder %s12, 4
      %s19 = sphi 0, %s38
      %s20 = sphi 0, %s34
      %s21 = sphi 0, %s30
      %s22 = sphi 0, %s19
      %s23 = sphi 0, %s20
      %s24 = sphi 0, %s21
      %s25 = sphi 0, %s22
      %s26 = sphi 0, %s23
      %s27 = sphi 0, %s24
      %s43 = sphi 0, %s45
      %s46 = sphi 0, %s43
      %s47 = sphi 0, %s46
      %s63 = sphi 0, %s47
      %s71 = sphi 0, %s73
      %s74 = sphi 0, %s71
      %s75 = sphi 0, %s74
      %s91 = sphi 0, %s75
      %s97 = sphi 0, %s99
      %s100 = sphi 0, %s97
      %s101 = sphi 0, %s100
      %s117 = sphi 0, %s101
      %s125 = sphi 0, %s127
      %s128 = sphi 0, %s125
      %s129 = sphi 0, %s128
      %s145 = sphi 0, %s129
    $region4: #{conv_unit.1} parent=1 // loop_header_branch
      %15 = sbr.rel (%p13) target = $region8
    $region5: #{conv_unit.1} parent=1 // loop_body
      %s17 = ssub.s32 %s12, 1
      %s18 = ssub.s32 %s12, 2
      %s28 = sadd.s32 1, %s21
      %p29 = scmp.ge.s32.totalorder %s28, 1
      %s30 = scalar_select %p29, 0, %s28
      %s31 = sadd.s32 1, %s20
      %s32 = scalar_select %p29, %s31, %s20
      %p33 = scmp.ge.s32.totalorder %s32, 1
      %s34 = scalar_select %p33, 0, %s32
      %s35 = sadd.s32 1, %s19
      %s36 = scalar_select %p33, %s35, %s19
      %p37 = scmp.ge.s32.totalorder %s36, 2
      %s38 = scalar_select %p37, 0, %s36
      %s39 = ssub.s32 %s19, %s38
      %s40 = ssub.s32 %s21, %s30
      %s41 = sor.u32 %s39, %s40
      %p42 = scmp.eq.s32.totalorder %s41, 0
      %s44 = sadd.s32 %s43, 1
      %s45 = scalar_select %p42, %s43, %s44
      %p48 = pneg %p42
      %p49 = scmp.eq.s32.totalorder %s12, 1
      %p50 = por %p48, %p49
      %p51 = scmp.ne.s32.totalorder %s43, %s46
      %p52 = scmp.eq.s32.totalorder %s12, 0
      %p53 = por %p51, %p52
      %p54 = scmp.ne.s32.totalorder %s43, %s46
      %p55 = scmp.eq.s32.totalorder %s17, 1
      %p56 = por %p54, %p55
      %p57 = scmp.ne.s32.totalorder %s46, %s47
      %p58 = scmp.eq.s32.totalorder %s17, 0
      %p59 = por %p57, %p58
      %p60 = scmp.ne.s32.totalorder %s46, %s47
      %p61 = scmp.eq.s32.totalorder %s18, 1
      %p62 = por %p60, %p61
      %p64 = scmp.ne.s32.totalorder %s47, %s63
      %p65 = scmp.eq.s32.totalorder %s18, 0
      %p66 = por %p64, %p65
      %s67 = ssub.s32 %s21, %s30
      %s68 = ssub.s32 %s20, %s34
      %s69 = sor.u32 %s67, %s68
      %p70 = scmp.eq.s32.totalorder %s69, 0
      %s72 = sadd.s32 %s71, 1
      %s73 = scalar_select %p70, %s71, %s72
      %p76 = pneg %p70
      %p77 = scmp.eq.s32.totalorder %s12, 1
      %p78 = por %p76, %p77
      %p79 = scmp.ne.s32.totalorder %s71, %s74
      %p80 = scmp.eq.s32.totalorder %s12, 0
      %p81 = por %p79, %p80
      %p82 = scmp.ne.s32.totalorder %s71, %s74
      %p83 = scmp.eq.s32.totalorder %s17, 1
      %p84 = por %p82, %p83
      %p85 = scmp.ne.s32.totalorder %s74, %s75
      %p86 = scmp.eq.s32.totalorder %s17, 0
      %p87 = por %p85, %p86
      %p88 = scmp.ne.s32.totalorder %s74, %s75
      %p89 = scmp.eq.s32.totalorder %s18, 1
      %p90 = por %p88, %p89
      %p92 = scmp.ne.s32.totalorder %s75, %s91
      %p93 = scmp.eq.s32.totalorder %s18, 0
      %p94 = por %p92, %p93
      %s95 = ssub.s32 %s20, %s34
      %p96 = scmp.eq.s32.totalorder %s95, 0
      %s98 = sadd.s32 %s97, 1
      %s99 = scalar_select %p96, %s97, %s98
      %p102 = pneg %p96
      %p103 = scmp.eq.s32.totalorder %s12, 1
      %p104 = por %p102, %p103
      %p105 = scmp.ne.s32.totalorder %s97, %s100
      %p106 = scmp.eq.s32.totalorder %s12, 0
      %p107 = por %p105, %p106
      %p108 = scmp.ne.s32.totalorder %s97, %s100
      %p109 = scmp.eq.s32.totalorder %s17, 1
      %p110 = por %p108, %p109
      %p111 = scmp.ne.s32.totalorder %s100, %s101
      %p112 = scmp.eq.s32.totalorder %s17, 0
      %p113 = por %p111, %p112
      %p114 = scmp.ne.s32.totalorder %s100, %s101
      %p115 = scmp.eq.s32.totalorder %s18, 1
      %p116 = por %p114, %p115
      %p118 = scmp.ne.s32.totalorder %s101, %s117
      %p119 = scmp.eq.s32.totalorder %s18, 0
      %p120 = por %p118, %p119
      %s121 = ssub.s32 %s19, %s38
      %s122 = ssub.s32 %s20, %s34
      %s123 = sor.u32 %s121, %s122
      %p124 = scmp.eq.s32.totalorder %s123, 0
      %s126 = sadd.s32 %s125, 1
      %s127 = scalar_select %p124, %s125, %s126
      %p130 = pneg %p124
      %p131 = scmp.eq.s32.totalorder %s12, 1
      %p132 = por %p130, %p131
      %p133 = scmp.ne.s32.totalorder %s125, %s128
      %p134 = scmp.eq.s32.totalorder %s12, 0
      %p135 = por %p133, %p134
      %p136 = scmp.ne.s32.totalorder %s125, %s128
      %p137 = scmp.eq.s32.totalorder %s17, 1
      %p138 = por %p136, %p137
      %p139 = scmp.ne.s32.totalorder %s128, %s129
      %p140 = scmp.eq.s32.totalorder %s17, 0
      %p141 = por %p139, %p140
      %p142 = scmp.ne.s32.totalorder %s128, %s129
      %p143 = scmp.eq.s32.totalorder %s18, 1
      %p144 = por %p142, %p143
      %p146 = scmp.ne.s32.totalorder %s129, %s145
      %p147 = scmp.eq.s32.totalorder %s18, 0
      %p148 = por %p146, %p147
      %p149 = scmp.le.s32.totalorder 1, %s12
      %p150 = scmp.lt.s32.totalorder %s12, 3
      %p151 = pnand %p149, %p150
      %p152 = pneg %p151
      // Predicated region
      $region9: #{conv_unit.1} parent=5 // pred_check
        _
      $region10: #{conv_unit.1} parent=5 // pred_check_branch
        %154 = sbr.rel (%p151) target = $region12
      $region11: #{conv_unit.1} parent=5 // pred_region
        %s155 = ssub.s32 %s12, 1
        // Predicated region
        $region13: #{conv_unit.1} parent=11 // pred_check
          %p156 = pneg %p87
        $region14: #{conv_unit.1} parent=11 // pred_check_branch
          %158 = sbr.rel (%p156) target = $region16
        $region15: #{conv_unit.1} parent=11 // pred_region
          %s159 = smul.u32 16, %s24
          %p160 = scmp.lt.s32.totalorder %s159, 15
          %s161 = scalar_select %p160, %s159, 15
          %p162 = scmp.lt.s32.totalorder %s23, 0
          %s163 = scalar_select %p162, %s23, 0
          %s164 = sadd.s32 %s163, %s161
          %s165 = smul.addr %s164, 4
          %s166 = scalar_lea.vmem %s1, %s165
          %s167 = smul.u32 16, %s24
        $region16: #{conv_unit.1} parent=11 // pred_fallthru
          _
        // Predicated region
        $region17: #{conv_unit.1} parent=11 // pred_check
          %p168 = pneg %p113
        $region18: #{conv_unit.1} parent=11 // pred_check_branch
          %170 = sbr.rel (%p168) target = $region20
        $region19: #{conv_unit.1} parent=11 // pred_region
          %p171 = scmp.lt.s32.totalorder %s23, 0
          %s172 = scalar_select %p171, %s23, 0
          %s173 = scalar_lea.vmem %s2, %s172
        $region20: #{conv_unit.1} parent=11 // pred_fallthru
          _
      $region12: #{conv_unit.1} parent=5 // pred_fallthru
        _
      %p174 = scmp.lt.s32.totalorder %s12, 2
      // Predicated region
      $region21: #{conv_unit.1} parent=5 // pred_check
        %p175 = pneg %p174
      $region22: #{conv_unit.1} parent=5 // pred_check_branch
        %177 = sbr.rel (%p175) target = $region24
      $region23: #{conv_unit.1} parent=5 // pred_region
        // Predicated region
        $region25: #{conv_unit.1} parent=23 // pred_check
          %p178 = pneg %p53
        $region26: #{conv_unit.1} parent=23 // pred_check_branch
          %180 = sbr.rel (%p178) target = $region28
        $region27: #{conv_unit.1} parent=23 // pred_region
          %s181 = smul.u32 32, %s19
          %p182 = scmp.lt.s32.totalorder %s181, 63
          %s183 = scalar_select %p182, %s181, 63
          %p184 = scmp.lt.s32.totalorder %s21, 0
          %s185 = scalar_select %p184, %s21, 0
          %s186 = sadd.s32 %s185, %s183
          %s187 = smul.addr %s186, 4
          %s188 = scalar_lea.vmem %s0, %s187
          %s189 = smul.u32 32, %s19
        $region28: #{conv_unit.1} parent=23 // pred_fallthru
          _
      $region24: #{conv_unit.1} parent=5 // pred_fallthru
        _
      %p190 = scmp.le.s32.totalorder 1, %s12
      %p191 = scmp.lt.s32.totalorder %s12, 3
      %p192 = pnand %p190, %p191
      %p193 = pneg %p192
      // Predicated region
      $region29: #{conv_unit.1} parent=5 // pred_check
        _
      $region30: #{conv_unit.1} parent=5 // pred_check_branch
        %195 = sbr.rel (%p192) target = $region32
      $region31: #{conv_unit.1} parent=5 // pred_region
        %s196 = ssub.s32 %s12, 1
        %s197 = smul.u32 32, %s22
        %p198 = scmp.lt.s32.totalorder %s197, 63
        %s199 = scalar_select %p198, %s197, 63
        %p200 = scmp.lt.s32.totalorder %s24, 0
        %s201 = scalar_select %p200, %s24, 0
        %s202 = sadd.s32 %s201, %s199
        %s203 = smul.addr %s202, 4
        %s204 = scalar_lea.vmem %s0, %s203
        %p205 = pneg %p59
        %p206 = pneg %p56
        %s207 = smul.u32 16, %s24
        %p208 = scmp.lt.s32.totalorder %s207, 15
        %s209 = scalar_select %p208, %s207, 15
        %p210 = scmp.lt.s32.totalorder %s23, 0
        %s211 = scalar_select %p210, %s23, 0
        %s212 = sadd.s32 %s211, %s209
        %s213 = smul.addr %s212, 4
        %s214 = scalar_lea.vmem %s1, %s213
        %p215 = pneg %p87
        %p216 = pneg %p84
        %p217 = scmp.lt.s32.totalorder %s23, 0
        %s218 = scalar_select %p217, %s23, 0
        %s219 = scalar_lea.vmem %s2, %s218
        %p220 = pneg %p113
        %p221 = pneg %p110
        %p222 = pneg %p141
        %p223 = pneg %p138
        %s224 = sand.u32 %s128, 1
        %s225 = scalar_lea.sflag [#allocation4], %s224
        %s226 = sand.u32 %s128, 1
        %s227 = smul.addr %s226, 128
        %s228 = scalar_lea.vmem [#allocation3], %s227
        %s229 = smul.u32 32, %s22
        %p230 = scmp.lt.s32.totalorder %s229, 63
        %s231 = scalar_select %p230, %s229, 63
        %p232 = scmp.lt.s32.totalorder %s24, 0
        %s233 = scalar_select %p232, %s24, 0
        %s234 = sadd.s32 %s233, %s231
        %s235 = smul.addr %s234, 4
        %s236 = scalar_lea.vmem %s0, %s235
        %s237 = smul.u32 32, %s22
        %s238 = smul.u32 16, %s24
        %p239 = scmp.lt.s32.totalorder %s238, 15
        %s240 = scalar_select %p239, %s238, 15
        %p241 = scmp.lt.s32.totalorder %s23, 0
        %s242 = scalar_select %p241, %s23, 0
        %s243 = sadd.s32 %s242, %s240
        %s244 = smul.addr %s243, 4
        %s245 = scalar_lea.vmem %s1, %s244
        %s246 = smul.u32 16, %s24
        %p247 = scmp.lt.s32.totalorder %s23, 0
        %s248 = scalar_select %p247, %s23, 0
        %s249 = scalar_lea.vmem %s2, %s248
        %s250 = smul.u32 32, %s22
        %p251 = scmp.eq.s32.totalorder %s24, 0
        // Predicated region
        $region33: #{conv_unit.1} parent=31 // pred_check
          %p252 = pneg %p251
        $region34: #{conv_unit.1} parent=31 // pred_check_branch
          %254 = sbr.rel (%p252) target = $region36
        $region35: #{conv_unit.1} parent=31 // pred_region
          %v255 = vld [vmem:[%s249] sm:$0x1]
          %v257 = vperm.slane %v255, 0
          %v259 = vadd.f32 %v257, 0.0
          %260 = vst [vmem:[#allocation2] sm:$0xff] %v259
          %261 = vst [vmem:[#allocation2 + $0x8] sm:$0xff] %v259
          %262 = vst [vmem:[#allocation2 + $0x10] sm:$0xff] %v259
          %263 = vst [vmem:[#allocation2 + $0x18] sm:$0xff] %v259
          %264 = vst [vmem:[#allocation2 + $0x20] sm:$0xff] %v259
          %265 = vst [vmem:[#allocation2 + $0x28] sm:$0xff] %v259
          %266 = vst [vmem:[#allocation2 + $0x30] sm:$0xff] %v259
          %267 = vst [vmem:[#allocation2 + $0x38] sm:$0xff] %v259
          %268 = vst [vmem:[#allocation2 + $0x40] sm:$0xff] %v259
          %269 = vst [vmem:[#allocation2 + $0x48] sm:$0xff] %v259
          %270 = vst [vmem:[#allocation2 + $0x50] sm:$0xff] %v259
          %271 = vst [vmem:[#allocation2 + $0x58] sm:$0xff] %v259
          %272 = vst [vmem:[#allocation2 + $0x60] sm:$0xff] %v259
          %273 = vst [vmem:[#allocation2 + $0x68] sm:$0xff] %v259
          %274 = vst [vmem:[#allocation2 + $0x70] sm:$0xff] %v259
          %275 = vst [vmem:[#allocation2 + $0x78] sm:$0xff] %v259
          %276 = vst [vmem:[#allocation2 + $0x80] sm:$0xff] %v259
          %277 = vst [vmem:[#allocation2 + $0x88] sm:$0xff] %v259
          %278 = vst [vmem:[#allocation2 + $0x90] sm:$0xff] %v259
          %279 = vst [vmem:[#allocation2 + $0x98] sm:$0xff] %v259
          %280 = vst [vmem:[#allocation2 + $0xa0] sm:$0xff] %v259
          %281 = vst [vmem:[#allocation2 + $0xa8] sm:$0xff] %v259
          %282 = vst [vmem:[#allocation2 + $0xb0] sm:$0xff] %v259
          %283 = vst [vmem:[#allocation2 + $0xb8] sm:$0xff] %v259
          %284 = vst [vmem:[#allocation2 + $0xc0] sm:$0xff] %v259
          %285 = vst [vmem:[#allocation2 + $0xc8] sm:$0xff] %v259
          %286 = vst [vmem:[#allocation2 + $0xd0] sm:$0xff] %v259
          %287 = vst [vmem:[#allocation2 + $0xd8] sm:$0xff] %v259
          %288 = vst [vmem:[#allocation2 + $0xe0] sm:$0xff] %v259
          %289 = vst [vmem:[#allocation2 + $0xe8] sm:$0xff] %v259
          %290 = vst [vmem:[#allocation2 + $0xf0] sm:$0xff] %v259
          %291 = vst [vmem:[#allocation2 + $0xf8] sm:$0xff] %v259
        $region36: #{conv_unit.1} parent=31 // pred_fallthru
          _
        %v292 = vld [vmem:[#allocation2] sm:$0xff]
        %v293 = vld [vmem:[#allocation2 + $0x8] sm:$0xff]
        %v294 = vld [vmem:[#allocation2 + $0x10] sm:$0xff]
        %v295 = vld [vmem:[#allocation2 + $0x18] sm:$0xff]
        %v296 = vld [vmem:[#allocation2 + $0x20] sm:$0xff]
        %v297 = vld [vmem:[#allocation2 + $0x28] sm:$0xff]
        %v298 = vld [vmem:[#allocation2 + $0x30] sm:$0xff]
        %v299 = vld [vmem:[#allocation2 + $0x38] sm:$0xff]
        %v300 = vld [vmem:[#allocation2 + $0x40] sm:$0xff]
        %v301 = vld [vmem:[#allocation2 + $0x48] sm:$0xff]
        %v302 = vld [vmem:[#allocation2 + $0x50] sm:$0xff]
        %v303 = vld [vmem:[#allocation2 + $0x58] sm:$0xff]
        %v304 = vld [vmem:[#allocation2 + $0x60] sm:$0xff]
        %v305 = vld [vmem:[#allocation2 + $0x68] sm:$0xff]
        %v306 = vld [vmem:[#allocation2 + $0x70] sm:$0xff]
        %v307 = vld [vmem:[#allocation2 + $0x78] sm:$0xff]
        %v308 = vld [vmem:[#allocation2 + $0x80] sm:$0xff]
        %v309 = vld [vmem:[#allocation2 + $0x88] sm:$0xff]
        %v310 = vld [vmem:[#allocation2 + $0x90] sm:$0xff]
        %v311 = vld [vmem:[#allocation2 + $0x98] sm:$0xff]
        %v312 = vld [vmem:[#allocation2 + $0xa0] sm:$0xff]
        %v313 = vld [vmem:[#allocation2 + $0xa8] sm:$0xff]
        %v314 = vld [vmem:[#allocation2 + $0xb0] sm:$0xff]
        %v315 = vld [vmem:[#allocation2 + $0xb8] sm:$0xff]
        %v316 = vld [vmem:[#allocation2 + $0xc0] sm:$0xff]
        %v317 = vld [vmem:[#allocation2 + $0xc8] sm:$0xff]
        %v318 = vld [vmem:[#allocation2 + $0xd0] sm:$0xff]
        %v319 = vld [vmem:[#allocation2 + $0xd8] sm:$0xff]
        %v320 = vld [vmem:[#allocation2 + $0xe0] sm:$0xff]
        %v321 = vld [vmem:[#allocation2 + $0xe8] sm:$0xff]
        %v322 = vld [vmem:[#allocation2 + $0xf0] sm:$0xff]
        %v323 = vld [vmem:[#allocation2 + $0xf8] sm:$0xff]
        %v324 = vld [vmem:[%s236] sm:$0xf]
        %v325 = vld [vmem:[%s236 + $0x4] sm:$0xf]
        %v326 = vld [vmem:[%s236 + $0x8] sm:$0xf]
        %v327 = vld [vmem:[%s236 + $0xc] sm:$0xf]
        %v328 = vld [vmem:[%s236 + $0x10] sm:$0xf]
        %v329 = vld [vmem:[%s236 + $0x14] sm:$0xf]
        %v330 = vld [vmem:[%s236 + $0x18] sm:$0xf]
        %v331 = vld [vmem:[%s236 + $0x1c] sm:$0xf]
        %v332 = vld [vmem:[%s236 + $0x20] sm:$0xf]
        %v333 = vld [vmem:[%s236 + $0x24] sm:$0xf]
        %v334 = vld [vmem:[%s236 + $0x28] sm:$0xf]
        %v335 = vld [vmem:[%s236 + $0x2c] sm:$0xf]
        %v336 = vld [vmem:[%s236 + $0x30] sm:$0xf]
        %v337 = vld [vmem:[%s236 + $0x34] sm:$0xf]
        %v338 = vld [vmem:[%s236 + $0x38] sm:$0xf]
        %v339 = vld [vmem:[%s236 + $0x3c] sm:$0xf]
        %v340 = vld [vmem:[%s236 + $0x40] sm:$0xf]
        %v341 = vld [vmem:[%s236 + $0x44] sm:$0xf]
        %v342 = vld [vmem:[%s236 + $0x48] sm:$0xf]
        %v343 = vld [vmem:[%s236 + $0x4c] sm:$0xf]
        %v344 = vld [vmem:[%s236 + $0x50] sm:$0xf]
        %v345 = vld [vmem:[%s236 + $0x54] sm:$0xf]
        %v346 = vld [vmem:[%s236 + $0x58] sm:$0xf]
        %v347 = vld [vmem:[%s236 + $0x5c] sm:$0xf]
        %v348 = vld [vmem:[%s236 + $0x60] sm:$0xf]
        %v349 = vld [vmem:[%s236 + $0x64] sm:$0xf]
        %v350 = vld [vmem:[%s236 + $0x68] sm:$0xf]
        %v351 = vld [vmem:[%s236 + $0x6c] sm:$0xf]
        %v352 = vld [vmem:[%s236 + $0x70] sm:$0xf]
        %v353 = vld [vmem:[%s236 + $0x74] sm:$0xf]
        %v354 = vld [vmem:[%s236 + $0x78] sm:$0xf]
        %v355 = vld [vmem:[%s236 + $0x7c] sm:$0xf]
        %v356 = vld [vmem:[%s245] sm:$0xf]
        %v357 = vld [vmem:[%s245 + $0x4] sm:$0xf]
        %v358 = vld [vmem:[%s245 + $0x8] sm:$0xf]
        %v359 = vld [vmem:[%s245 + $0xc] sm:$0xf]
        %v360 = vld [vmem:[%s245 + $0x10] sm:$0xf]
        %v361 = vld [vmem:[%s245 + $0x14] sm:$0xf]
        %v362 = vld [vmem:[%s245 + $0x18] sm:$0xf]
        %v363 = vld [vmem:[%s245 + $0x1c] sm:$0xf]
        %v364 = vld [vmem:[%s245 + $0x20] sm:$0xf]
        %v365 = vld [vmem:[%s245 + $0x24] sm:$0xf]
        %v366 = vld [vmem:[%s245 + $0x28] sm:$0xf]
        %v367 = vld [vmem:[%s245 + $0x2c] sm:$0xf]
        %v368 = vld [vmem:[%s245 + $0x30] sm:$0xf]
        %v369 = vld [vmem:[%s245 + $0x34] sm:$0xf]
        %v370 = vld [vmem:[%s245 + $0x38] sm:$0xf]
        %v371 = vld [vmem:[%s245 + $0x3c] sm:$0xf]
        %v404 = vunpack.c.l.b16 %v324
        %v405 = vunpack.c.l.b16 %v325
        %v406 = vunpack.c.l.b16 %v326
        %v407 = vunpack.c.l.b16 %v327
        %v408 = vunpack.c.l.b16 %v328
        %v409 = vunpack.c.l.b16 %v329
        %v410 = vunpack.c.l.b16 %v330
        %v411 = vunpack.c.l.b16 %v331
        %v412 = vunpack.c.l.b16 %v332
        %v413 = vunpack.c.l.b16 %v333
        %v414 = vunpack.c.l.b16 %v334
        %v415 = vunpack.c.l.b16 %v335
        %v416 = vunpack.c.l.b16 %v336
        %v417 = vunpack.c.l.b16 %v337
        %v418 = vunpack.c.l.b16 %v338
        %v419 = vunpack.c.l.b16 %v339
        %v420 = vunpack.c.l.b16 %v340
        %v421 = vunpack.c.l.b16 %v341
        %v422 = vunpack.c.l.b16 %v342
        %v423 = vunpack.c.l.b16 %v343
        %v424 = vunpack.c.l.b16 %v344
        %v425 = vunpack.c.l.b16 %v345
        %v426 = vunpack.c.l.b16 %v346
        %v427 = vunpack.c.l.b16 %v347
        %v428 = vunpack.c.l.b16 %v348
        %v429 = vunpack.c.l.b16 %v349
        %v430 = vunpack.c.l.b16 %v350
        %v431 = vunpack.c.l.b16 %v351
        %v432 = vunpack.c.l.b16 %v352
        %v433 = vunpack.c.l.b16 %v353
        %v434 = vunpack.c.l.b16 %v354
        %v435 = vunpack.c.l.b16 %v355
        %v436 = vpack.c.b16 %v405, %v404
        %v437 = vpack.c.b16 %v407, %v406
        %v438 = vpack.c.b16 %v409, %v408
        %v439 = vpack.c.b16 %v411, %v410
        %v440 = vpack.c.b16 %v413, %v412
        %v441 = vpack.c.b16 %v415, %v414
        %v442 = vpack.c.b16 %v417, %v416
        %v443 = vpack.c.b16 %v419, %v418
        %v444 = vpack.c.b16 %v421, %v420
        %v445 = vpack.c.b16 %v423, %v422
        %v446 = vpack.c.b16 %v425, %v424
        %v447 = vpack.c.b16 %v427, %v426
        %v448 = vpack.c.b16 %v429, %v428
        %v449 = vpack.c.b16 %v431, %v430
        %v450 = vpack.c.b16 %v433, %v432
        %v451 = vpack.c.b16 %v435, %v434
        %v484 = vunpack.c.l.b16 %v356
        %v485 = vunpack.c.l.b16 %v357
        %v486 = vunpack.c.l.b16 %v358
        %v487 = vunpack.c.l.b16 %v359
        %v488 = vunpack.c.l.b16 %v360
        %v489 = vunpack.c.l.b16 %v361
        %v490 = vunpack.c.l.b16 %v362
        %v491 = vunpack.c.l.b16 %v363
        %v492 = vunpack.c.l.b16 %v364
        %v493 = vunpack.c.l.b16 %v365
        %v494 = vunpack.c.l.b16 %v366
        %v495 = vunpack.c.l.b16 %v367
        %v496 = vunpack.c.l.b16 %v368
        %v497 = vunpack.c.l.b16 %v369
        %v498 = vunpack.c.l.b16 %v370
        %v499 = vunpack.c.l.b16 %v371
        %v500 = vpack.c.b16 %v485, %v484
        %v501 = vpack.c.b16 %v487, %v486
        %v502 = vpack.c.b16 %v489, %v488
        %v503 = vpack.c.b16 %v491, %v490
        %v504 = vpack.c.b16 %v493, %v492
        %v505 = vpack.c.b16 %v495, %v494
        %v506 = vpack.c.b16 %v497, %v496
        %v507 = vpack.c.b16 %v499, %v498
        %516 = vmatpush.bf16.msra.mxu0 %v507
        %517 = vmatpush.bf16.msra.mxu0 %v506
        %518 = vmatpush.bf16.msra.mxu0 %v505
        %519 = vmatpush.bf16.msra.mxu0 %v504
        %520 = vmatpush.bf16.msra.mxu0 %v503
        %521 = vmatpush.bf16.msra.mxu0 %v502
        %522 = vmatpush.bf16.msra.mxu0 %v501
        %523 = vmatpush.bf16.msra.mxu0 %v500
        %524 = vmatmul.bf16.gmra.mxu0 %v436
        %v525 = vpop.f32.mrf.mxu0
        %v526 = vadd.f32 0.0, %v525
        %v527 = vpop.f32.mrf.mxu0
        %v528 = vadd.f32 0.0, %v527
        %529 = vmatmul.bf16.gmra.mxu0 %v437
        %v530 = vpop.f32.mrf.mxu0
        %v531 = vadd.f32 0.0, %v530
        %v532 = vpop.f32.mrf.mxu0
        %v533 = vadd.f32 0.0, %v532
        %534 = vmatmul.bf16.gmra.mxu0 %v438
        %v535 = vpop.f32.mrf.mxu0
        %v536 = vadd.f32 0.0, %v535
        %v537 = vpop.f32.mrf.mxu0
        %v538 = vadd.f32 0.0, %v537
        %539 = vmatmul.bf16.gmra.mxu0 %v439
        %v540 = vpop.f32.mrf.mxu0
        %v541 = vadd.f32 0.0, %v540
        %v542 = vpop.f32.mrf.mxu0
        %v543 = vadd.f32 0.0, %v542
        %544 = vmatmul.bf16.gmra.mxu0 %v440
        %v545 = vpop.f32.mrf.mxu0
        %v546 = vadd.f32 0.0, %v545
        %v547 = vpop.f32.mrf.mxu0
        %v548 = vadd.f32 0.0, %v547
        %549 = vmatmul.bf16.gmra.mxu0 %v441
        %v550 = vpop.f32.mrf.mxu0
        %v551 = vadd.f32 0.0, %v550
        %v552 = vpop.f32.mrf.mxu0
        %v553 = vadd.f32 0.0, %v552
        %554 = vmatmul.bf16.gmra.mxu0 %v442
        %v555 = vpop.f32.mrf.mxu0
        %v556 = vadd.f32 0.0, %v555
        %v557 = vpop.f32.mrf.mxu0
        %v558 = vadd.f32 0.0, %v557
        %559 = vmatmul.bf16.gmra.mxu0 %v443
        %v560 = vpop.f32.mrf.mxu0
        %v561 = vadd.f32 0.0, %v560
        %v562 = vpop.f32.mrf.mxu0
        %v563 = vadd.f32 0.0, %v562
        %564 = vmatmul.bf16.gmra.mxu0 %v444
        %v565 = vpop.f32.mrf.mxu0
        %v566 = vadd.f32 0.0, %v565
        %v567 = vpop.f32.mrf.mxu0
        %v568 = vadd.f32 0.0, %v567
        %569 = vmatmul.bf16.gmra.mxu0 %v445
        %v570 = vpop.f32.mrf.mxu0
        %v571 = vadd.f32 0.0, %v570
        %v572 = vpop.f32.mrf.mxu0
        %v573 = vadd.f32 0.0, %v572
        %574 = vmatmul.bf16.gmra.mxu0 %v446
        %v575 = vpop.f32.mrf.mxu0
        %v576 = vadd.f32 0.0, %v575
        %v577 = vpop.f32.mrf.mxu0
        %v578 = vadd.f32 0.0, %v577
        %579 = vmatmul.bf16.gmra.mxu0 %v447
        %v580 = vpop.f32.mrf.mxu0
        %v581 = vadd.f32 0.0, %v580
        %v582 = vpop.f32.mrf.mxu0
        %v583 = vadd.f32 0.0, %v582
        %584 = vmatmul.bf16.gmra.mxu0 %v448
        %v585 = vpop.f32.mrf.mxu0
        %v586 = vadd.f32 0.0, %v585
        %v587 = vpop.f32.mrf.mxu0
        %v588 = vadd.f32 0.0, %v587
        %589 = vmatmul.bf16.gmra.mxu0 %v449
        %v590 = vpop.f32.mrf.mxu0
        %v591 = vadd.f32 0.0, %v590
        %v592 = vpop.f32.mrf.mxu0
        %v593 = vadd.f32 0.0, %v592
        %594 = vmatmul.bf16.gmra.mxu0 %v450
        %v595 = vpop.f32.mrf.mxu0
        %v596 = vadd.f32 0.0, %v595
        %v597 = vpop.f32.mrf.mxu0
        %v598 = vadd.f32 0.0, %v597
        %599 = vmatmul.bf16.gmra.mxu0 %v451
        %v600 = vpop.f32.mrf.mxu0
        %v601 = vadd.f32 0.0, %v600
        %v602 = vpop.f32.mrf.mxu0
        %v603 = vadd.f32 0.0, %v602
        %604 = vdwg.mxu0
        %v605 = vadd.f32 %v292, %v526
        %v606 = vadd.f32 %v293, %v528
        %v607 = vadd.f32 %v294, %v531
        %v608 = vadd.f32 %v295, %v533
        %v609 = vadd.f32 %v296, %v536
        %v610 = vadd.f32 %v297, %v538
        %v611 = vadd.f32 %v298, %v541
        %v612 = vadd.f32 %v299, %v543
        %v613 = vadd.f32 %v300, %v546
        %v614 = vadd.f32 %v301, %v548
        %v615 = vadd.f32 %v302, %v551
        %v616 = vadd.f32 %v303, %v553
        %v617 = vadd.f32 %v304, %v556
        %v618 = vadd.f32 %v305, %v558
        %v619 = vadd.f32 %v306, %v561
        %v620 = vadd.f32 %v307, %v563
        %v621 = vadd.f32 %v308, %v566
        %v622 = vadd.f32 %v309, %v568
        %v623 = vadd.f32 %v310, %v571
        %v624 = vadd.f32 %v311, %v573
        %v625 = vadd.f32 %v312, %v576
        %v626 = vadd.f32 %v313, %v578
        %v627 = vadd.f32 %v314, %v581
        %v628 = vadd.f32 %v315, %v583
        %v629 = vadd.f32 %v316, %v586
        %v630 = vadd.f32 %v317, %v588
        %v631 = vadd.f32 %v318, %v591
        %v632 = vadd.f32 %v319, %v593
        %v633 = vadd.f32 %v320, %v596
        %v634 = vadd.f32 %v321, %v598
        %v635 = vadd.f32 %v322, %v601
        %v636 = vadd.f32 %v323, %v603
        %637 = vst [vmem:[#allocation2] sm:$0xff] %v605
        %638 = vst [vmem:[#allocation2 + $0x8] sm:$0xff] %v606
        %639 = vst [vmem:[#allocation2 + $0x10] sm:$0xff] %v607
        %640 = vst [vmem:[#allocation2 + $0x18] sm:$0xff] %v608
        %641 = vst [vmem:[#allocation2 + $0x20] sm:$0xff] %v609
        %642 = vst [vmem:[#allocation2 + $0x28] sm:$0xff] %v610
        %643 = vst [vmem:[#allocation2 + $0x30] sm:$0xff] %v611
        %644 = vst [vmem:[#allocation2 + $0x38] sm:$0xff] %v612
        %645 = vst [vmem:[#allocation2 + $0x40] sm:$0xff] %v613
        %646 = vst [vmem:[#allocation2 + $0x48] sm:$0xff] %v614
        %647 = vst [vmem:[#allocation2 + $0x50] sm:$0xff] %v615
        %648 = vst [vmem:[#allocation2 + $0x58] sm:$0xff] %v616
        %649 = vst [vmem:[#allocation2 + $0x60] sm:$0xff] %v617
        %650 = vst [vmem:[#allocation2 + $0x68] sm:$0xff] %v618
        %651 = vst [vmem:[#allocation2 + $0x70] sm:$0xff] %v619
        %652 = vst [vmem:[#allocation2 + $0x78] sm:$0xff] %v620
        %653 = vst [vmem:[#allocation2 + $0x80] sm:$0xff] %v621
        %654 = vst [vmem:[#allocation2 + $0x88] sm:$0xff] %v622
        %655 = vst [vmem:[#allocation2 + $0x90] sm:$0xff] %v623
        %656 = vst [vmem:[#allocation2 + $0x98] sm:$0xff] %v624
        %657 = vst [vmem:[#allocation2 + $0xa0] sm:$0xff] %v625
        %658 = vst [vmem:[#allocation2 + $0xa8] sm:$0xff] %v626
        %659 = vst [vmem:[#allocation2 + $0xb0] sm:$0xff] %v627
        %660 = vst [vmem:[#allocation2 + $0xb8] sm:$0xff] %v628
        %661 = vst [vmem:[#allocation2 + $0xc0] sm:$0xff] %v629
        %662 = vst [vmem:[#allocation2 + $0xc8] sm:$0xff] %v630
        %663 = vst [vmem:[#allocation2 + $0xd0] sm:$0xff] %v631
        %664 = vst [vmem:[#allocation2 + $0xd8] sm:$0xff] %v632
        %665 = vst [vmem:[#allocation2 + $0xe0] sm:$0xff] %v633
        %666 = vst [vmem:[#allocation2 + $0xe8] sm:$0xff] %v634
        %667 = vst [vmem:[#allocation2 + $0xf0] sm:$0xff] %v635
        %668 = vst [vmem:[#allocation2 + $0xf8] sm:$0xff] %v636
        // Predicated region
        $region37: #{conv_unit.1} parent=31 // pred_check
          %p669 = pneg %p251
        $region38: #{conv_unit.1} parent=31 // pred_check_branch
          %671 = sbr.rel (%p669) target = $region40
        $region39: #{conv_unit.1} parent=31 // pred_region
          %v672 = vld [vmem:[#allocation2] sm:$0xff]
          %v673 = vld [vmem:[#allocation2 + $0x8] sm:$0xff]
          %v674 = vld [vmem:[#allocation2 + $0x10] sm:$0xff]
          %v675 = vld [vmem:[#allocation2 + $0x18] sm:$0xff]
          %v676 = vld [vmem:[#allocation2 + $0x20] sm:$0xff]
          %v677 = vld [vmem:[#allocation2 + $0x28] sm:$0xff]
          %v678 = vld [vmem:[#allocation2 + $0x30] sm:$0xff]
          %v679 = vld [vmem:[#allocation2 + $0x38] sm:$0xff]
          %v680 = vld [vmem:[#allocation2 + $0x40] sm:$0xff]
          %v681 = vld [vmem:[#allocation2 + $0x48] sm:$0xff]
          %v682 = vld [vmem:[#allocation2 + $0x50] sm:$0xff]
          %v683 = vld [vmem:[#allocation2 + $0x58] sm:$0xff]
          %v684 = vld [vmem:[#allocation2 + $0x60] sm:$0xff]
          %v685 = vld [vmem:[#allocation2 + $0x68] sm:$0xff]
          %v686 = vld [vmem:[#allocation2 + $0x70] sm:$0xff]
          %v687 = vld [vmem:[#allocation2 + $0x78] sm:$0xff]
          %v688 = vld [vmem:[#allocation2 + $0x80] sm:$0xff]
          %v689 = vld [vmem:[#allocation2 + $0x88] sm:$0xff]
          %v690 = vld [vmem:[#allocation2 + $0x90] sm:$0xff]
          %v691 = vld [vmem:[#allocation2 + $0x98] sm:$0xff]
          %v692 = vld [vmem:[#allocation2 + $0xa0] sm:$0xff]
          %v693 = vld [vmem:[#allocation2 + $0xa8] sm:$0xff]
          %v694 = vld [vmem:[#allocation2 + $0xb0] sm:$0xff]
          %v695 = vld [vmem:[#allocation2 + $0xb8] sm:$0xff]
          %v696 = vld [vmem:[#allocation2 + $0xc0] sm:$0xff]
          %v697 = vld [vmem:[#allocation2 + $0xc8] sm:$0xff]
          %v698 = vld [vmem:[#allocation2 + $0xd0] sm:$0xff]
          %v699 = vld [vmem:[#allocation2 + $0xd8] sm:$0xff]
          %v700 = vld [vmem:[#allocation2 + $0xe0] sm:$0xff]
          %v701 = vld [vmem:[#allocation2 + $0xe8] sm:$0xff]
          %v702 = vld [vmem:[#allocation2 + $0xf0] sm:$0xff]
          %v703 = vld [vmem:[#allocation2 + $0xf8] sm:$0xff]
          %v704 = vpack.c.bf16 %v672, %v672
          %v705 = vpack.c.bf16 %v673, %v673
          %v706 = vpack.c.bf16 %v674, %v674
          %v707 = vpack.c.bf16 %v675, %v675
          %v708 = vpack.c.bf16 %v676, %v676
          %v709 = vpack.c.bf16 %v677, %v677
          %v710 = vpack.c.bf16 %v678, %v678
          %v711 = vpack.c.bf16 %v679, %v679
          %v712 = vpack.c.bf16 %v680, %v680
          %v713 = vpack.c.bf16 %v681, %v681
          %v714 = vpack.c.bf16 %v682, %v682
          %v715 = vpack.c.bf16 %v683, %v683
          %v716 = vpack.c.bf16 %v684, %v684
          %v717 = vpack.c.bf16 %v685, %v685
          %v718 = vpack.c.bf16 %v686, %v686
          %v719 = vpack.c.bf16 %v687, %v687
          %v720 = vpack.c.bf16 %v688, %v688
          %v721 = vpack.c.bf16 %v689, %v689
          %v722 = vpack.c.bf16 %v690, %v690
          %v723 = vpack.c.bf16 %v691, %v691
          %v724 = vpack.c.bf16 %v692, %v692
          %v725 = vpack.c.bf16 %v693, %v693
          %v726 = vpack.c.bf16 %v694, %v694
          %v727 = vpack.c.bf16 %v695, %v695
          %v728 = vpack.c.bf16 %v696, %v696
          %v729 = vpack.c.bf16 %v697, %v697
          %v730 = vpack.c.bf16 %v698, %v698
          %v731 = vpack.c.bf16 %v699, %v699
          %v732 = vpack.c.bf16 %v700, %v700
          %v733 = vpack.c.bf16 %v701, %v701
          %v734 = vpack.c.bf16 %v702, %v702
          %v735 = vpack.c.bf16 %v703, %v703
          %736 = vst [vmem:[%s228] sm:$0xf] %v704
          %737 = vst [vmem:[%s228 + $0x4] sm:$0xf] %v705
          %738 = vst [vmem:[%s228 + $0x8] sm:$0xf] %v706
          %739 = vst [vmem:[%s228 + $0xc] sm:$0xf] %v707
          %740 = vst [vmem:[%s228 + $0x10] sm:$0xf] %v708
          %741 = vst [vmem:[%s228 + $0x14] sm:$0xf] %v709
          %742 = vst [vmem:[%s228 + $0x18] sm:$0xf] %v710
          %743 = vst [vmem:[%s228 + $0x1c] sm:$0xf] %v711
          %744 = vst [vmem:[%s228 + $0x20] sm:$0xf] %v712
          %745 = vst [vmem:[%s228 + $0x24] sm:$0xf] %v713
          %746 = vst [vmem:[%s228 + $0x28] sm:$0xf] %v714
          %747 = vst [vmem:[%s228 + $0x2c] sm:$0xf] %v715
          %748 = vst [vmem:[%s228 + $0x30] sm:$0xf] %v716
          %749 = vst [vmem:[%s228 + $0x34] sm:$0xf] %v717
          %750 = vst [vmem:[%s228 + $0x38] sm:$0xf] %v718
          %751 = vst [vmem:[%s228 + $0x3c] sm:$0xf] %v719
          %752 = vst [vmem:[%s228 + $0x40] sm:$0xf] %v720
          %753 = vst [vmem:[%s228 + $0x44] sm:$0xf] %v721
          %754 = vst [vmem:[%s228 + $0x48] sm:$0xf] %v722
          %755 = vst [vmem:[%s228 + $0x4c] sm:$0xf] %v723
          %756 = vst [vmem:[%s228 + $0x50] sm:$0xf] %v724
          %757 = vst [vmem:[%s228 + $0x54] sm:$0xf] %v725
          %758 = vst [vmem:[%s228 + $0x58] sm:$0xf] %v726
          %759 = vst [vmem:[%s228 + $0x5c] sm:$0xf] %v727
          %760 = vst [vmem:[%s228 + $0x60] sm:$0xf] %v728
          %761 = vst [vmem:[%s228 + $0x64] sm:$0xf] %v729
          %762 = vst [vmem:[%s228 + $0x68] sm:$0xf] %v730
          %763 = vst [vmem:[%s228 + $0x6c] sm:$0xf] %v731
          %764 = vst [vmem:[%s228 + $0x70] sm:$0xf] %v732
          %765 = vst [vmem:[%s228 + $0x74] sm:$0xf] %v733
          %766 = vst [vmem:[%s228 + $0x78] sm:$0xf] %v734
          %767 = vst [vmem:[%s228 + $0x7c] sm:$0xf] %v735
        $region40: #{conv_unit.1} parent=31 // pred_fallthru
          _
        %s768 = sand.u32 %s128, 1
        %s769 = scalar_lea.sflag [#allocation4], %s768
        %s770 = sand.u32 %s128, 1
        %s771 = smul.addr %s770, 128
        %s772 = scalar_lea.vmem [#allocation3], %s771
        // Predicated region
        $region41: #{conv_unit.1} parent=31 // pred_check
          %p773 = pneg %p138
        $region42: #{conv_unit.1} parent=31 // pred_check_branch
          %775 = sbr.rel (%p773) target = $region44
        $region43: #{conv_unit.1} parent=31 // pred_region
          %s776 = smul.u32 32, %s22
          %778 = vsyncadd %s769, 0
          %s779 = sadd.s32 %s23, %s776
          %s780 = smul.addr %s779, 4
          %s781 = scalar_lea.hbm %s3, %s780
          %s782 = sshll.u32 %s772, 4
          %s783 = int_to_ptr.vmem [resolvable:$true] %s782
          %s784 = sshll.u32 %s781, 4
          %s785 = int_to_ptr.hbm [resolvable:$true] %s784
          %790 = dma.vmem_to_hbm [thread:$0]  %s783, 2048, %s785, %s769, 64, 64, 4
        $region44: #{conv_unit.1} parent=31 // pred_fallthru
          _
      $region32: #{conv_unit.1} parent=5 // pred_fallthru
        _
      %p791 = scmp.le.s32.totalorder 2, %s12
      // Predicated region
      $region45: #{conv_unit.1} parent=5 // pred_check
        %p792 = pneg %p791
      $region46: #{conv_unit.1} parent=5 // pred_check_branch
        %794 = sbr.rel (%p792) target = $region48
      $region47: #{conv_unit.1} parent=5 // pred_region
        %s795 = ssub.s32 %s12, 2
        // Predicated region
        $region49: #{conv_unit.1} parent=47 // pred_check
          %p796 = pneg %p144
        $region50: #{conv_unit.1} parent=47 // pred_check_branch
          %798 = sbr.rel (%p796) target = $region52
        $region51: #{conv_unit.1} parent=47 // pred_region
          %s799 = sand.u32 %s129, 1
          %s800 = scalar_lea.sflag [#allocation4], %s799
          %s801 = sand.u32 %s129, 1
          %s802 = smul.addr %s801, 128
          %s803 = scalar_lea.vmem [#allocation3], %s802
          %805 = dma.done %s800, 2048
        $region52: #{conv_unit.1} parent=47 // pred_fallthru
          _
      $region48: #{conv_unit.1} parent=5 // pred_fallthru
        _
    $region6: #{conv_unit.1} parent=1 // loop_footer
      %s16 = sadd.s32 1, %s12
    $region7: #{conv_unit.1} parent=1 // loop_footer_branch
      %11 = sbr.rel target = $region3
    $region8: #{conv_unit.1} parent=1 // loop_exit
      _
    %806 = vsyncpa [#allocation4], 1
    %s807 = scalar_lea.sflag [#allocation4], 1
    %808 = vsyncpa %s807, 1

</llo_original>
